<compile_context>
chip_gen: v6e
topology: v6e:2x2x1
jax: 0.10.0
libtpu: 0.0.40
codegen_flags: <defaults>
</compile_context>

<pallas_src>
import functools

import jax
import jax.numpy as jnp
from jax import lax
from jax.experimental import pallas as pl
from jax.experimental.pallas import tpu as pltpu

_LANE = 128


def _round_up(v: int, m: int) -> int:
    return ((v + m - 1) // m) * m


def _cdiv(a: int, b: int) -> int:
    return -(-a // b)


def _max_margin_kernel(x_ref, crow_ref, ccol_ref, out_ref, *,
                       n_rows: int, block_rows: int, ragged: bool):
    x = x_ref[...]                        # (tm, n)  native dtype (bf16 stays bf16)
    c_row = crow_ref[...]                 # (tm, 1)  margin - x[i, i] for tile rows
    c_col = ccol_ref[...]                 # (1,  n)  margin - x[j, j] for all cols
    # relu(margin - (d - x)) == max((margin - d) + x, 0): one add + one max each.
    t = jnp.maximum(c_row + x, 0) + jnp.maximum(c_col + x, 0)
    if ragged:
        # Last row tile is partial: out-of-bounds rows contain unspecified data
        # and MUST be zeroed before the reduce.
        valid = n_rows - pl.program_id(0) * block_rows
        row_ids = lax.broadcasted_iota(jnp.int32, (block_rows, 1), 0)
        t = jnp.where(row_ids < valid, t, 0)
    # Sublane reduce -> lane-dense (1, n) partial column sums, accumulated in f32.
    out_ref[...] = jnp.sum(t.astype(jnp.float32), axis=0, keepdims=True)[None]


def max_margin_ranking_loss(x: jax.Array, margin: float = 1.0,
                            fix_norm: bool = True,
                            block_rows: int | None = None) -> jax.Array:
    """Pallas TPU implementation of MaxMarginRankingLoss.forward."""
    n, m = x.shape
    assert n == m, "input must be a square similarity matrix"

    # bf16 stays bf16 end-to-end (half the HBM bytes, packed VALU on v6e/v7x);
    # anything else is computed in f32.
    if x.dtype == jnp.bfloat16:
        compute_dtype = jnp.bfloat16
    else:
        compute_dtype = jnp.float32
        if x.dtype != jnp.float32:
            x = x.astype(jnp.float32)

    itemsize = jnp.dtype(x.dtype).itemsize
    sub = 16 if itemsize == 2 else 8          # min sublane multiple (bf16 vs f32)

    # Tile byte budget derived from the chip's VMEM (v7x has 64 MiB vs 128 MiB
    # on v5e/v6e); stay well inside the default scoped-VMEM limit with
    # double-buffering + elementwise temps.
    try:
        vmem_bytes = int(pltpu.get_tpu_info().vmem_capacity_bytes)
    except Exception:  # interpret mode / older runtimes
        vmem_bytes = 64 * 1024 * 1024
    target_tile_bytes = min(4 * 1024 * 1024, vmem_bytes // 32)

    if block_rows is None:
        tm = max(sub, target_tile_bytes // max(1, n * itemsize))
        tm = min(tm, 1024)
        # Ensure >= 2 row tiles so a 2-TensorCore chip (v7x) can shard the
        # "parallel" grid axis across cores.
        n_aligned = _round_up(n, sub)
        tm = min(tm, _round_up(_cdiv(n_aligned, 2), sub))
        tm = max(sub, (tm // sub) * sub)
    else:
        tm = max(sub, _round_up(block_rows, sub))
    if tm >= n:
        tm = n  # single full-extent block (block dim == array dim bypasses alignment)

    num_tiles = _cdiv(n, tm)
    ragged = (n % tm) != 0

    # Pre-biased diagonal: c = margin - diag(x).  Tiny (n elements).
    d = jnp.diagonal(x).astype(jnp.float32)
    c = (jnp.float32(margin) - d).astype(compute_dtype)
    c_row = c.reshape(n, 1)
    c_col = c.reshape(1, n)

    flops = int(6 * n * n)
    bytes_accessed = int(n * n * itemsize + 2 * n * jnp.dtype(compute_dtype).itemsize
                         + num_tiles * n * 4)

    kernel = functools.partial(_max_margin_kernel,
                               n_rows=n, block_rows=tm, ragged=ragged)

    col_sums = pl.pallas_call(
        kernel,
        out_shape=jax.ShapeDtypeStruct((num_tiles, 1, n), jnp.float32),
        grid=(num_tiles,),
        in_specs=[
            pl.BlockSpec((tm, n), lambda i: (i, 0)),   # x row tile (full-width cols)
            pl.BlockSpec((tm, 1), lambda i: (i, 0)),   # margin - diag, tile rows
            pl.BlockSpec((1, n), lambda i: (0, 0)),    # margin - diag, resident row
        ],
        out_specs=pl.BlockSpec((1, 1, n), lambda i: (i, 0, 0)),
        compiler_params=pltpu.CompilerParams(
            dimension_semantics=("parallel",)),
        cost_estimate=pl.CostEstimate(flops=flops, transcendentals=0,
                                      bytes_accessed=bytes_accessed),
    )(x, c_row, c_col)

    total = jnp.sum(col_sums, dtype=jnp.float32)
    if fix_norm:
        # Each diagonal element contributes exactly 2*relu(margin); remove it
        # analytically instead of masking per tile.
        total = total - 2.0 * n * max(float(margin), 0.0)
        denom = 2.0 * n * (n - 1)   # n == 1 -> nan, same as torch mean of empty
    else:
        denom = 2.0 * n * n
    return total / denom


def _reference_loss(x, margin=1.0, fix_norm=True):
    """Pure-JAX reference mirroring the PyTorch code path (for validation)."""
    n = x.shape[0]
    d = jnp.diag(x)
    x1 = jnp.broadcast_to(d[:, None], (n, n)).reshape(-1, 1)
    x1 = jnp.concatenate([x1, x1], axis=0)
    x2 = jnp.concatenate([x.reshape(-1, 1), x.T.reshape(-1, 1)], axis=0)
    mm = jnp.maximum(margin - (x1 - x2), 0.0)
    if fix_norm:
        keep = jnp.ones((n, n)) - jnp.eye(n)
        keepc = jnp.concatenate([keep.reshape(-1, 1), keep.T.reshape(-1, 1)], 0)
        mask = keepc.flatten() > 0
        return jnp.sum(jnp.where(mask, mm.flatten(), 0.0)) / jnp.sum(mask)
    return jnp.mean(mm)


if __name__ == "__main__":
    key = jax.random.PRNGKey(0)
    k1, k2 = jax.random.split(key)

    # Small square similarity matrix (batch x batch), f32. 2 row tiles, aligned.
    n = 32
    x = jax.random.normal(k1, (n, n), dtype=jnp.float32)

    loss = jax.block_until_ready(
        max_margin_ranking_loss(x, margin=1.0, fix_norm=True))
    ref = _reference_loss(x, margin=1.0, fix_norm=True)
    assert jnp.allclose(loss, ref, rtol=1e-5, atol=1e-5), (loss, ref)

    loss_nf = jax.block_until_ready(
        max_margin_ranking_loss(x, margin=1.0, fix_norm=False))
    ref_nf = _reference_loss(x, margin=1.0, fix_norm=False)
    assert jnp.allclose(loss_nf, ref_nf, rtol=1e-5, atol=1e-5), (loss_nf, ref_nf)

    # n not a multiple of the tile: auto tile size, ragged last row tile.
    n2 = 200
    x2 = jax.random.normal(k2, (n2, n2), dtype=jnp.float32)
    loss2a = jax.block_until_ready(
        max_margin_ranking_loss(x2, margin=0.5, fix_norm=True))
    ref2 = _reference_loss(x2, margin=0.5, fix_norm=True)
    assert jnp.allclose(loss2a, ref2, rtol=1e-5, atol=1e-5), (loss2a, ref2)

    # Explicit small block: 4 tiles, last one only 8 valid rows (ragged mask path).
    loss2b = jax.block_until_ready(
        max_margin_ranking_loss(x2, margin=0.5, fix_norm=True, block_rows=64))
    assert jnp.allclose(loss2b, ref2, rtol=1e-5, atol=1e-5), (loss2b, ref2)

    # bf16 input: bf16 stays in HBM and elementwise math runs in bf16,
    # accumulation in f32 (reference computed in f32).
    x3 = x2.astype(jnp.bfloat16)
    loss3 = jax.block_until_ready(
        max_margin_ranking_loss(x3, margin=1.0, fix_norm=True, block_rows=64))
    ref3 = _reference_loss(x3.astype(jnp.float32), margin=1.0, fix_norm=True)
    assert jnp.allclose(loss3, ref3, rtol=2e-2, atol=2e-2), (loss3, ref3)

    print("KERNEL_OK")
</pallas_src>

<mosaic_0001>
module attributes {stable_mosaic.version = 11 : i64} {
  func.func @_max_margin_kernel(%arg0: i32, %arg1: memref<16x32xf32, #tpu.memory_space<vmem>>, %arg2: memref<16x1xf32, #tpu.memory_space<vmem>>, %arg3: memref<1x32xf32, #tpu.memory_space<vmem>>, %arg4: memref<1x1x32xf32, #tpu.memory_space<vmem>>) attributes {dimension_semantics = [#tpu.dimension_semantics<parallel>], iteration_bounds = array<i64: 2>, scalar_prefetch = 0 : i64, scratch_operands = 0 : i64, tpu.core_type = #tpu.core_type<tc>, window_params = [{transform_indices = @transform_0, window_bounds = array<i64: 16, 32>}, {transform_indices = @transform_1, window_bounds = array<i64: 16, 1>}, {pipeline_mode = #tpu.pipeline_mode<synchronous>, transform_indices = @transform_2, window_bounds = array<i64: 1, 32>}, {transform_indices = @transform_3, window_bounds = array<i64: 1, 1, 32>}]} {
    %c0 = arith.constant 0 : index
    %c0_0 = arith.constant 0 : index
    %0 = vector.load %arg1[%c0, %c0_0] : memref<16x32xf32, #tpu.memory_space<vmem>>, vector<16x32xf32>
    %c0_1 = arith.constant 0 : index
    %c0_2 = arith.constant 0 : index
    %1 = vector.load %arg2[%c0_1, %c0_2] : memref<16x1xf32, #tpu.memory_space<vmem>>, vector<16x1xf32>
    %c0_3 = arith.constant 0 : index
    %c0_4 = arith.constant 0 : index
    %2 = vector.load %arg3[%c0_3, %c0_4] : memref<1x32xf32, #tpu.memory_space<vmem>>, vector<1x32xf32>
    %3 = vector.broadcast %1 : vector<16x1xf32> to vector<16x32xf32>
    %4 = arith.addf %3, %0 : vector<16x32xf32>
    %cst = arith.constant 0.000000e+00 : f32
    %5 = vector.broadcast %cst : f32 to vector<16x32xf32>
    %6 = arith.maximumf %4, %5 : vector<16x32xf32>
    %7 = vector.broadcast %2 : vector<1x32xf32> to vector<16x32xf32>
    %8 = arith.addf %7, %0 : vector<16x32xf32>
    %cst_5 = arith.constant 0.000000e+00 : f32
    %9 = vector.broadcast %cst_5 : f32 to vector<16x32xf32>
    %10 = arith.maximumf %8, %9 : vector<16x32xf32>
    %11 = arith.addf %6, %10 : vector<16x32xf32>
    %cst_6 = arith.constant dense<0.000000e+00> : vector<32xf32>
    %12 = vector.multi_reduction <add>, %11, %cst_6 [0] : vector<16x32xf32> to vector<32xf32>
    %13 = vector.shape_cast %12 : vector<32xf32> to vector<1x32xf32>
    %14 = vector.shape_cast %13 : vector<1x32xf32> to vector<1x1x32xf32>
    %c0_7 = arith.constant 0 : index
    %c0_8 = arith.constant 0 : index
    %c0_9 = arith.constant 0 : index
    %15 = vector.load %arg4[%c0_7, %c0_8, %c0_9] : memref<1x1x32xf32, #tpu.memory_space<vmem>>, vector<1x1x32xf32>
    tpu.vector_store %arg4[%c0_7, %c0_8, %c0_9], %14 {strides = array<i32>} : memref<1x1x32xf32, #tpu.memory_space<vmem>>, vector<1x1x32xf32>,
    return
  }
  func.func @transform_0(%arg0: i32) -> (i32, i32) {
    %c0_i32 = arith.constant 0 : i32
    %c0_i32_0 = arith.constant 0 : i32
    return %arg0, %c0_i32 : i32, i32
  }
  func.func @transform_1(%arg0: i32) -> (i32, i32) {
    %c0_i32 = arith.constant 0 : i32
    %c0_i32_0 = arith.constant 0 : i32
    return %arg0, %c0_i32 : i32, i32
  }
  func.func @transform_2(%arg0: i32) -> (i32, i32) {
    %c0_i32 = arith.constant 0 : i32
    %c0_i32_0 = arith.constant 0 : i32
    %c0_i32_1 = arith.constant 0 : i32
    return %c0_i32, %c0_i32_0 : i32, i32
  }
  func.func @transform_3(%arg0: i32) -> (i32, i32, i32) {
    %c0_i32 = arith.constant 0 : i32
    %c0_i32_0 = arith.constant 0 : i32
    %c0_i32_1 = arith.constant 0 : i32
    return %arg0, %c0_i32, %c0_i32_0 : i32, i32, i32
  }
}

</mosaic_0001>

<llo_original>
// kernel: tpu_custom_call.1
$region0: #{tpu_custom_call.1}
  #allocation0 [shape = 'u32[]', space=smem, size = 0x4, offset = 0x4, fixed_abs, tag = 'smem constant byte address 0x4 - core index']
  #allocation1 [shape = 'u32[144,128]{1,0:T(1,128)}', space=vmem, size = 0x12000, scoped, tag = 'internal scratch']
  %s0 = inlined_call_operand.vmem [shape: f32[32,32], index: 0, kind: input, shape index: {}]
  %s1 = inlined_call_operand.vmem [shape: f32[32,1], index: 1, kind: input, shape index: {}]
  %s2 = inlined_call_operand.vmem [shape: f32[1,32], index: 2, kind: input, shape index: {}]
  %s3 = inlined_call_operand.hbm [shape: f32[2,1,32], index: 3, kind: output, shape index: {}]
  %s4 = sld [smem:[#allocation0]]
  $region45: #{tpu_custom_call.1} parent=0
    _
  %s6 = ssub.s32 1, %s4
  %s7 = scalar_select 0, %s6, %s4
  $region1: #{tpu_custom_call.1} parent=0
    #allocation2 [shape = 'u8[1024]{0}', space=vmem, size = 0x400, scoped, tag = 'output window, operand 0']
    #allocation3 [shape = 's32[2]{0}', space=sflag, size = 0x8, scoped, tag = 'scoped memory for tpu_custom_call.1']
    %8 = vsyncpa [#allocation3], 0
    %s9 = scalar_lea.sflag [#allocation3], 1
    %10 = vsyncpa %s9, 0
    loop: start=0, step=1, limit=4
    $region2: #{tpu_custom_call.1} parent=1 // loop_pre_header
      _
    $region3: #{tpu_custom_call.1} parent=1 // loop_header
      %s12 = sphi 0, %s16
      %p13 = scmp.ge.s32.totalorder %s12, 4
      %s22 = sphi 0, %s24
      %s25 = sphi 0, %s22
      %s26 = sphi 0, %s25
      %s42 = sphi 0, %s26
      %s48 = sphi 0, %s50
      %s51 = sphi 0, %s48
      %s52 = sphi 0, %s51
      %s68 = sphi 0, %s52
      %s72 = sphi 0, %s72
      %s74 = sphi 0, %s72
      %s75 = sphi 0, %s74
      %s89 = sphi 0, %s75
      %s95 = sphi 0, %s97
      %s98 = sphi 0, %s95
      %s99 = sphi 0, %s98
      %s115 = sphi 0, %s99
    $region4: #{tpu_custom_call.1} parent=1 // loop_header_branch
      %15 = sbr.rel (%p13) target = $region8
    $region5: #{tpu_custom_call.1} parent=1 // loop_body
      %s17 = ssub.s32 %s12, 1
      %s18 = ssub.s32 %s12, 2
      %s19 = sadd.s32 %s12, 1
      %s20 = ssub.s32 %s12, %s19
      %p21 = scmp.eq.s32.totalorder %s20, 0
      %s23 = sadd.s32 %s22, 1
      %s24 = scalar_select %p21, %s22, %s23
      %p27 = pneg %p21
      %p28 = scmp.eq.s32.totalorder %s12, 1
      %p29 = por %p27, %p28
      %p30 = scmp.ne.s32.totalorder %s22, %s25
      %p31 = scmp.eq.s32.totalorder %s12, 0
      %p32 = por %p30, %p31
      %p33 = scmp.ne.s32.totalorder %s22, %s25
      %p34 = scmp.eq.s32.totalorder %s17, 1
      %p35 = por %p33, %p34
      %p36 = scmp.ne.s32.totalorder %s25, %s26
      %p37 = scmp.eq.s32.totalorder %s17, 0
      %p38 = por %p36, %p37
      %p39 = scmp.ne.s32.totalorder %s25, %s26
      %p40 = scmp.eq.s32.totalorder %s18, 1
      %p41 = por %p39, %p40
      %p43 = scmp.ne.s32.totalorder %s26, %s42
      %p44 = scmp.eq.s32.totalorder %s18, 0
      %p45 = por %p43, %p44
      %s46 = ssub.s32 %s12, %s19
      %p47 = scmp.eq.s32.totalorder %s46, 0
      %s49 = sadd.s32 %s48, 1
      %s50 = scalar_select %p47, %s48, %s49
      %p53 = pneg %p47
      %p54 = scmp.eq.s32.totalorder %s12, 1
      %p55 = por %p53, %p54
      %p56 = scmp.ne.s32.totalorder %s48, %s51
      %p57 = scmp.eq.s32.totalorder %s12, 0
      %p58 = por %p56, %p57
      %p59 = scmp.ne.s32.totalorder %s48, %s51
      %p60 = scmp.eq.s32.totalorder %s17, 1
      %p61 = por %p59, %p60
      %p62 = scmp.ne.s32.totalorder %s51, %s52
      %p63 = scmp.eq.s32.totalorder %s17, 0
      %p64 = por %p62, %p63
      %p65 = scmp.ne.s32.totalorder %s51, %s52
      %p66 = scmp.eq.s32.totalorder %s18, 1
      %p67 = por %p65, %p66
      %p69 = scmp.ne.s32.totalorder %s52, %s68
      %p70 = scmp.eq.s32.totalorder %s18, 0
      %p71 = por %p69, %p70
      %s73 = sadd.s32 %s72, 1
      %p76 = scmp.eq.s32.totalorder %s12, 1
      %p77 = scmp.ne.s32.totalorder %s72, %s74
      %p78 = scmp.eq.s32.totalorder %s12, 0
      %p79 = por %p77, %p78
      %p80 = scmp.ne.s32.totalorder %s72, %s74
      %p81 = scmp.eq.s32.totalorder %s17, 1
      %p82 = por %p80, %p81
      %p83 = scmp.ne.s32.totalorder %s74, %s75
      %p84 = scmp.eq.s32.totalorder %s17, 0
      %p85 = por %p83, %p84
      %p86 = scmp.ne.s32.totalorder %s74, %s75
      %p87 = scmp.eq.s32.totalorder %s18, 1
      %p88 = por %p86, %p87
      %p90 = scmp.ne.s32.totalorder %s75, %s89
      %p91 = scmp.eq.s32.totalorder %s18, 0
      %p92 = por %p90, %p91
      %s93 = ssub.s32 %s12, %s19
      %p94 = scmp.eq.s32.totalorder %s93, 0
      %s96 = sadd.s32 %s95, 1
      %s97 = scalar_select %p94, %s95, %s96
      %p100 = pneg %p94
      %p101 = scmp.eq.s32.totalorder %s12, 1
      %p102 = por %p100, %p101
      %p103 = scmp.ne.s32.totalorder %s95, %s98
      %p104 = scmp.eq.s32.totalorder %s12, 0
      %p105 = por %p103, %p104
      %p106 = scmp.ne.s32.totalorder %s95, %s98
      %p107 = scmp.eq.s32.totalorder %s17, 1
      %p108 = por %p106, %p107
      %p109 = scmp.ne.s32.totalorder %s98, %s99
      %p110 = scmp.eq.s32.totalorder %s17, 0
      %p111 = por %p109, %p110
      %p112 = scmp.ne.s32.totalorder %s98, %s99
      %p113 = scmp.eq.s32.totalorder %s18, 1
      %p114 = por %p112, %p113
      %p116 = scmp.ne.s32.totalorder %s99, %s115
      %p117 = scmp.eq.s32.totalorder %s18, 0
      %p118 = por %p116, %p117
      %p119 = scmp.le.s32.totalorder 1, %s12
      %p120 = scmp.lt.s32.totalorder %s12, 3
      %p121 = pnand %p119, %p120
      %p122 = pneg %p121
      // Predicated region
      $region9: #{tpu_custom_call.1} parent=5 // pred_check
        _
      $region10: #{tpu_custom_call.1} parent=5 // pred_check_branch
        %124 = sbr.rel (%p121) target = $region12
      $region11: #{tpu_custom_call.1} parent=5 // pred_region
        %s125 = ssub.s32 %s12, 1
        // Predicated region
        $region13: #{tpu_custom_call.1} parent=11 // pred_check
          %p126 = pneg %p85
        $region14: #{tpu_custom_call.1} parent=11 // pred_check_branch
          %128 = sbr.rel (%p126) target = $region16
        $region15: #{tpu_custom_call.1} parent=11 // pred_region
          _
        $region16: #{tpu_custom_call.1} parent=11 // pred_fallthru
          _
      $region12: #{tpu_custom_call.1} parent=5 // pred_fallthru
        _
      %p129 = scmp.lt.s32.totalorder %s12, 2
      // Predicated region
      $region17: #{tpu_custom_call.1} parent=5 // pred_check
        %p130 = pneg %p129
      $region18: #{tpu_custom_call.1} parent=5 // pred_check_branch
        %132 = sbr.rel (%p130) target = $region20
      $region19: #{tpu_custom_call.1} parent=5 // pred_region
        // Predicated region
        $region21: #{tpu_custom_call.1} parent=19 // pred_check
          %p133 = pneg %p32
        $region22: #{tpu_custom_call.1} parent=19 // pred_check_branch
          %135 = sbr.rel (%p133) target = $region24
        $region23: #{tpu_custom_call.1} parent=19 // pred_region
          %s136 = smul.u32 2, %s12
          %p137 = scmp.lt.s32.totalorder %s136, 3
          %s138 = scalar_select %p137, %s136, 3
          %s139 = smul.addr %s138, 8
          %s140 = scalar_lea.vmem %s0, %s139
          %s141 = smul.u32 2, %s12
        $region24: #{tpu_custom_call.1} parent=19 // pred_fallthru
          _
        // Predicated region
        $region25: #{tpu_custom_call.1} parent=19 // pred_check
          %p142 = pneg %p58
        $region26: #{tpu_custom_call.1} parent=19 // pred_check_branch
          %144 = sbr.rel (%p142) target = $region28
        $region27: #{tpu_custom_call.1} parent=19 // pred_region
          %s145 = smul.u32 2, %s12
          %p146 = scmp.lt.s32.totalorder %s145, 3
          %s147 = scalar_select %p146, %s145, 3
          %s148 = smul.addr %s147, 8
          %s149 = scalar_lea.vmem %s1, %s148
          %s150 = smul.u32 2, %s12
        $region28: #{tpu_custom_call.1} parent=19 // pred_fallthru
          _
      $region20: #{tpu_custom_call.1} parent=5 // pred_fallthru
        _
      %p151 = scmp.le.s32.totalorder 1, %s12
      %p152 = scmp.lt.s32.totalorder %s12, 3
      %p153 = pnand %p151, %p152
      %p154 = pneg %p153
      // Predicated region
      $region29: #{tpu_custom_call.1} parent=5 // pred_check
        _
      $region30: #{tpu_custom_call.1} parent=5 // pred_check_branch
        %156 = sbr.rel (%p153) target = $region32
      $region31: #{tpu_custom_call.1} parent=5 // pred_region
        %s157 = ssub.s32 %s12, 1
        %s158 = smul.u32 2, %s17
        %p159 = scmp.lt.s32.totalorder %s158, 3
        %s160 = scalar_select %p159, %s158, 3
        %s161 = smul.addr %s160, 8
        %s162 = scalar_lea.vmem %s0, %s161
        %p163 = pneg %p38
        %p164 = pneg %p35
        %s165 = smul.u32 2, %s17
        %p166 = scmp.lt.s32.totalorder %s165, 3
        %s167 = scalar_select %p166, %s165, 3
        %s168 = smul.addr %s167, 8
        %s169 = scalar_lea.vmem %s1, %s168
        %p170 = pneg %p64
        %p171 = pneg %p61
        %p172 = pneg %p85
        %p173 = pneg %p82
        %p174 = pneg %p111
        %p175 = pneg %p108
        %s176 = sand.u32 %s98, 1
        %s177 = scalar_lea.sflag [#allocation3], %s176
        %s178 = sand.u32 %s98, 1
        %s179 = scalar_lea.vmem [#allocation2], %s178
        %s180 = smul.u32 2, %s17
        %p181 = scmp.lt.s32.totalorder %s180, 3
        %s182 = scalar_select %p181, %s180, 3
        %s183 = smul.addr %s182, 8
        %s184 = scalar_lea.vmem %s0, %s183
        %s185 = smul.u32 2, %s17
        %s186 = smul.u32 2, %s17
        %p187 = scmp.lt.s32.totalorder %s186, 3
        %s188 = scalar_select %p187, %s186, 3
        %s189 = smul.addr %s188, 8
        %s190 = scalar_lea.vmem %s1, %s189
        %s191 = smul.u32 2, %s17
        %v192 = vld [vmem:[%s184] sm:$0xff]
        %v193 = vld [vmem:[%s184 + $0x8] sm:$0xff]
        %v194 = vld [vmem:[%s190] sm:$0xff]
        %v195 = vld [vmem:[%s190 + $0x8] sm:$0xff]
        %v196 = vld [vmem:[%s2] sm:$0x1]
        %198 = vset.pattern.permute.xlu0 0
        %199 = vperm.xlu0 %198, %v194
        %v200 = vpop.permute.xlu0 %199
        %203 = vset.pattern.permute.xlu0 0
        %204 = vperm.xlu0 %203, %v195
        %v205 = vpop.permute.xlu0 %204
        %v207 = vadd.f32 %v200, %v192
        %v208 = vadd.f32 %v205, %v193
        %v209 = vmax.f32 %v207, 0.0
        %v210 = vmax.f32 %v208, 0.0
        %v212 = vlaneseq
        %v213 = vshrl.u32 %v212, 7
        %v214 = vsub.s32 0, %v213
        %v215 = vrot.slane %v196, %v214
        %v217 = vadd.f32 %v215, %v192
        %v218 = vadd.f32 %v215, %v193
        %v219 = vmax.f32 %v217, 0.0
        %v220 = vmax.f32 %v218, 0.0
        %v221 = vadd.f32 %v209, %v219
        %v222 = vadd.f32 %v210, %v220
        %vm223 = vcmask 261120
        %v224 = vsel %vm223, %v221, 0.0
        %v225 = vsel %vm223, %v222, 0.0
        %v226 = vadd.f32 %v224, %v225
        %v227 = vrot.slane %v226, 4
        %v228 = vadd.f32 %v226, %v227
        %v229 = vrot.slane %v228, 2
        %v230 = vadd.f32 %v228, %v229
        %v231 = vrot.slane %v230, 1
        %v232 = vadd.f32 %v230, %v231
        %vm233 = vcmask 253952
        %234 = vst.msk [vmem:[%s179] sm:$0x1] %vm233, %v232
        %s235 = sand.u32 %s98, 1
        %s236 = scalar_lea.sflag [#allocation3], %s235
        %s237 = sand.u32 %s98, 1
        %s238 = scalar_lea.vmem [#allocation2], %s237
        // Predicated region
        $region33: #{tpu_custom_call.1} parent=31 // pred_check
          %p239 = pneg %p108
        $region34: #{tpu_custom_call.1} parent=31 // pred_check_branch
          %241 = sbr.rel (%p239) target = $region36
        $region35: #{tpu_custom_call.1} parent=31 // pred_region
          %s243 = ssub.s32 16, 16
          %244 = vsyncadd %s236, %s243
          %s245 = smul.addr %s17, 16
          %s246 = scalar_lea.hbm %s3, %s245
          %s248 = sshll.u32 %s238, 4
          %s249 = int_to_ptr.vmem [resolvable:$true] %s248
          %251 = dma.vmem_to_hbm [thread:$0]  %s249, 16, %s246, %s236
        $region36: #{tpu_custom_call.1} parent=31 // pred_fallthru
          _
      $region32: #{tpu_custom_call.1} parent=5 // pred_fallthru
        _
      %p252 = scmp.le.s32.totalorder 2, %s12
      // Predicated region
      $region37: #{tpu_custom_call.1} parent=5 // pred_check
        %p253 = pneg %p252
      $region38: #{tpu_custom_call.1} parent=5 // pred_check_branch
        %255 = sbr.rel (%p253) target = $region40
      $region39: #{tpu_custom_call.1} parent=5 // pred_region
        %s256 = ssub.s32 %s12, 2
        // Predicated region
        $region41: #{tpu_custom_call.1} parent=39 // pred_check
          %p257 = pneg %p114
        $region42: #{tpu_custom_call.1} parent=39 // pred_check_branch
          %259 = sbr.rel (%p257) target = $region44
        $region43: #{tpu_custom_call.1} parent=39 // pred_region
          %s260 = sand.u32 %s99, 1
          %s261 = scalar_lea.sflag [#allocation3], %s260
          %s262 = sand.u32 %s99, 1
          %s263 = scalar_lea.vmem [#allocation2], %s262
          %264 = dma.done %s261, 16
        $region44: #{tpu_custom_call.1} parent=39 // pred_fallthru
          _
      $region40: #{tpu_custom_call.1} parent=5 // pred_fallthru
        _
    $region6: #{tpu_custom_call.1} parent=1 // loop_footer
      %s16 = sadd.s32 1, %s12
    $region7: #{tpu_custom_call.1} parent=1 // loop_footer_branch
      %11 = sbr.rel target = $region3
    $region8: #{tpu_custom_call.1} parent=1 // loop_exit
      _
    %265 = vsyncpa [#allocation3], 1
    %s266 = scalar_lea.sflag [#allocation3], 1
    %267 = vsyncpa %s266, 1

</llo_original>
